<compile_context>
chip_gen: v7x
topology: tpu7x:2x2x1
jax: 0.10.0
libtpu: 0.0.40
codegen_flags: <defaults>
</compile_context>

<pallas_src>
import functools

import jax
import jax.numpy as jnp
from jax.experimental import pallas as pl
from jax.experimental.pallas import tpu as pltpu


def _dilated_residual_kernel(x_ref, lh_ref, rh_ref, w1s_ref, b1_ref,
                             w2_ref, b2_ref, o_ref, *, shift):
    # x_ref  : (1, C, TL)   one lane-dense activation tile (f32)
    # lh_ref : (1, 1, C, s) the s columns just left of this tile (0 at t<0)
    # rh_ref : (1, 1, C, s) the s columns just right of this tile (0 at t>=T)
    # w1s_ref: (C, 3C)      dilated-conv taps stacked along the contraction
    # b1_ref : (C, 1)
    # w2_ref : (C, C)       1x1 conv, (C_out, C_in)
    # b2_ref : (C, 1)
    # o_ref  : (1, C, TL)
    s = shift
    x = x_ref[0]                      # (C, TL)
    lh = lh_ref[0, 0]                 # (C, s)
    rh = rh_ref[0, 0]                 # (C, s)
    C, TL = x.shape

    # Shifted operands: neighbour-tile halo splice + in-tile slice.  These are
    # tile-sized and consumed by the MXU immediately (no slab-sized copies).
    x_prev = jnp.concatenate([lh, x[:, :TL - s]], axis=1)   # x[., l - s]
    x_next = jnp.concatenate([x[:, s:], rh], axis=1)        # x[., l + s]

    # Fused dilated conv: single (C, 3C) @ (3C, TL) MXU push (K = 3C).
    xs = jnp.concatenate([x_prev, x, x_next], axis=0)       # (3C, TL)
    y = jnp.dot(w1s_ref[...], xs, preferred_element_type=jnp.float32)
    y = jnp.maximum(y + b1_ref[...], 0.0)                   # bias + ReLU

    # 1x1 conv == channel matmul; dropout == identity (eval mode).
    z = jnp.dot(w2_ref[...], y, preferred_element_type=jnp.float32) + b2_ref[...]

    # Residual add with the input tile.
    o_ref[0] = (x + z).astype(o_ref.dtype)


def _round_up(a, b):
    return (a + b - 1) // b * b


def dilated_residual_layer(x, w1, b1, w2, b2, *, dilation, block_l=512):
    """x: (N, C, T, W) float32 (NCHW, like PyTorch). Returns the same shape.

    w1: (3, C_in, C_out) dilated-conv taps, b1: (C_out,)
    w2: (C_in, C_out) 1x1 conv,             b2: (C_out,)
    """
    N, C, T, W = x.shape
    L = T * W
    s = dilation * W                     # temporal shift in flattened-L units

    # Lane tile: multiple of 128; pad L up to a multiple of it.  Lane-dense
    # (unmasked) stores; the pad also supplies the conv's right-side zeros.
    TL = max(128, (block_l // 128) * 128)
    Lp = _round_up(max(L, TL), TL)
    nL = Lp // TL
    assert s < TL, "dilation*W must be smaller than the lane tile (raise block_l)"

    x_flat = x.reshape(N, C, L)          # contiguous reshape, no transpose
    if Lp != L:
        x_flat = jnp.pad(x_flat, ((0, 0), (0, 0), (0, Lp - L)))

    # Halo side inputs: for tile j the s columns just before / after it
    # (zeros at the sequence boundaries == the conv's zero padding).  These
    # are small (N*nL*C*s) gathers built once in the wrapper; no full shifted
    # copy of the activation is fed to the kernel.
    x_r = jnp.pad(x_flat, ((0, 0), (0, 0), (s, 0)))[:, :, :Lp]   # x[., l - s]
    x_l = jnp.pad(x_flat, ((0, 0), (0, 0), (0, s)))[:, :, s:]    # x[., l + s]
    lh = x_r.reshape(N, C, nL, TL)[:, :, :, :s].transpose(0, 2, 1, 3)       # (N,nL,C,s)
    rh = x_l.reshape(N, C, nL, TL)[:, :, :, TL - s:].transpose(0, 2, 1, 3)  # (N,nL,C,s)

    # Parameter prep: stack the three taps along the contraction axis so the
    # dilated conv is one K=3C matmul; orient everything (C_out, C_in).
    w1s = jnp.concatenate([w1[0].T, w1[1].T, w1[2].T], axis=1)   # (C, 3C)
    w2_t = w2.T                                                  # (C, C)
    b1_c = b1.reshape(C, 1)
    b2_c = b2.reshape(C, 1)

    kernel = functools.partial(_dilated_residual_kernel, shift=s)

    flops = 2 * N * Lp * (3 * C * C + C * C)          # two matmuls
    bytes_accessed = 4 * (2 * N * C * Lp + 2 * N * nL * C * s
                          + 4 * C * C + 2 * C)

    out_flat = pl.pallas_call(
        kernel,
        out_shape=jax.ShapeDtypeStruct((N, C, Lp), x.dtype),
        grid_spec=pltpu.PrefetchScalarGridSpec(
            num_scalar_prefetch=0,
            grid=(N, nL),
            in_specs=[
                pl.BlockSpec((1, C, TL), lambda n, j: (n, 0, j)),       # x tile
                pl.BlockSpec((1, 1, C, s), lambda n, j: (n, j, 0, 0)),  # left halo
                pl.BlockSpec((1, 1, C, s), lambda n, j: (n, j, 0, 0)),  # right halo
                pl.BlockSpec((C, 3 * C), lambda n, j: (0, 0)),          # stacked w1
                pl.BlockSpec((C, 1), lambda n, j: (0, 0)),              # b1
                pl.BlockSpec((C, C), lambda n, j: (0, 0)),              # w2
                pl.BlockSpec((C, 1), lambda n, j: (0, 0)),              # b2
            ],
            out_specs=pl.BlockSpec((1, C, TL), lambda n, j: (n, 0, j)),
        ),
        compiler_params=pltpu.CompilerParams(
            dimension_semantics=("parallel", "parallel"),
            vmem_limit_bytes=32 * 1024 * 1024),
        cost_estimate=pl.CostEstimate(
            flops=flops, transcendentals=0, bytes_accessed=bytes_accessed),
    )(x_flat, lh, rh, w1s, b1_c, w2_t, b2_c)

    return out_flat[:, :, :L].reshape(N, C, T, W)


def ref_forward(x, w1, b1, w2, b2, *, dilation):
    """Pure-JAX reference using lax.conv_general_dilated (NCHW, like torch)."""
    # w1: (3, Cin, Cout) -> torch OIHW (Cout, Cin, 3, 1)
    w1_t = jnp.transpose(w1, (2, 1, 0))[..., None]
    y = jax.lax.conv_general_dilated(
        x, w1_t, window_strides=(1, 1),
        padding=((dilation, dilation), (0, 0)),
        rhs_dilation=(dilation, 1),
        dimension_numbers=("NCHW", "OIHW", "NCHW"))
    y = y + b1[None, :, None, None]
    y = jnp.maximum(y, 0.0)
    # w2: (Cin, Cout) -> OIHW (Cout, Cin, 1, 1)
    w2_t = jnp.transpose(w2, (1, 0))[..., None, None]
    z = jax.lax.conv_general_dilated(
        y, w2_t, window_strides=(1, 1), padding="VALID",
        dimension_numbers=("NCHW", "OIHW", "NCHW"))
    z = z + b2[None, :, None, None]
    return x + z


if __name__ == "__main__":
    # Small shapes consistent with the module (in_channels == out_channels).
    # L = T*W = 512, lane tile 128 -> grid (N, nL) = (2, 4): 8 pipeline steps,
    # and an even parallel-grid product for v7x's two TensorCores.
    N, C, T, W = 2, 16, 32, 16
    dilation = 2

    key = jax.random.PRNGKey(0)
    kx, k1, kb1, k2, kb2 = jax.random.split(key, 5)

    x = jax.random.normal(kx, (N, C, T, W), dtype=jnp.float32)

    # Deterministic synthetic parameters (shapes match the PyTorch module).
    w1 = 0.1 * jax.random.normal(k1, (3, C, C), dtype=jnp.float32)  # (kH, Cin, Cout)
    b1 = 0.1 * jax.random.normal(kb1, (C,), dtype=jnp.float32)
    w2 = 0.1 * jax.random.normal(k2, (C, C), dtype=jnp.float32)     # (Cin, Cout)
    b2 = 0.1 * jax.random.normal(kb2, (C,), dtype=jnp.float32)

    out = dilated_residual_layer(x, w1, b1, w2, b2, dilation=dilation,
                                 block_l=128)
    out = jax.block_until_ready(out)

    ref = ref_forward(x, w1, b1, w2, b2, dilation=dilation)
    assert out.shape == x.shape
    assert jnp.allclose(out, ref, atol=1e-4, rtol=1e-4), "mismatch vs reference"

    print("KERNEL_OK")
</pallas_src>

<mosaic_0001>
module attributes {stable_mosaic.version = 11 : i64} {
  func.func @_dilated_residual_kernel(%arg0: i32, %arg1: i32, %arg2: memref<1x16x128xf32, #tpu.memory_space<vmem>>, %arg3: memref<1x1x16x32xf32, #tpu.memory_space<vmem>>, %arg4: memref<1x1x16x32xf32, #tpu.memory_space<vmem>>, %arg5: memref<16x48xf32, #tpu.memory_space<vmem>>, %arg6: memref<16x1xf32, #tpu.memory_space<vmem>>, %arg7: memref<16x16xf32, #tpu.memory_space<vmem>>, %arg8: memref<16x1xf32, #tpu.memory_space<vmem>>, %arg9: memref<1x16x128xf32, #tpu.memory_space<vmem>>) attributes {dimension_semantics = [#tpu.dimension_semantics<parallel>, #tpu.dimension_semantics<parallel>], iteration_bounds = array<i64: 2, 4>, scalar_prefetch = 0 : i64, scratch_operands = 0 : i64, tpu.core_type = #tpu.core_type<tc>, window_params = [{transform_indices = @transform_0, window_bounds = array<i64: 1, 16, 128>}, {transform_indices = @transform_1, window_bounds = array<i64: 1, 1, 16, 32>}, {transform_indices = @transform_2, window_bounds = array<i64: 1, 1, 16, 32>}, {pipeline_mode = #tpu.pipeline_mode<synchronous>, transform_indices = @transform_3, window_bounds = array<i64: 16, 48>}, {pipeline_mode = #tpu.pipeline_mode<synchronous>, transform_indices = @transform_4, window_bounds = array<i64: 16, 1>}, {pipeline_mode = #tpu.pipeline_mode<synchronous>, transform_indices = @transform_5, window_bounds = array<i64: 16, 16>}, {pipeline_mode = #tpu.pipeline_mode<synchronous>, transform_indices = @transform_6, window_bounds = array<i64: 16, 1>}, {transform_indices = @transform_7, window_bounds = array<i64: 1, 16, 128>}]} {
    %c0 = arith.constant 0 : index
    %c0_0 = arith.constant 0 : index
    %c0_1 = arith.constant 0 : index
    %0 = vector.load %arg2[%c0, %c0_0, %c0_1] : memref<1x16x128xf32, #tpu.memory_space<vmem>>, vector<1x16x128xf32>
    %1 = vector.shape_cast %0 : vector<1x16x128xf32> to vector<16x128xf32>
    %c0_2 = arith.constant 0 : index
    %c0_3 = arith.constant 0 : index
    %c0_4 = arith.constant 0 : index
    %c0_5 = arith.constant 0 : index
    %2 = vector.load %arg3[%c0_2, %c0_3, %c0_4, %c0_5] : memref<1x1x16x32xf32, #tpu.memory_space<vmem>>, vector<1x1x16x32xf32>
    %3 = vector.shape_cast %2 : vector<1x1x16x32xf32> to vector<16x32xf32>
    %c0_6 = arith.constant 0 : index
    %c0_7 = arith.constant 0 : index
    %c0_8 = arith.constant 0 : index
    %c0_9 = arith.constant 0 : index
    %4 = vector.load %arg4[%c0_6, %c0_7, %c0_8, %c0_9] : memref<1x1x16x32xf32, #tpu.memory_space<vmem>>, vector<1x1x16x32xf32>
    %5 = vector.shape_cast %4 : vector<1x1x16x32xf32> to vector<16x32xf32>
    %6 = vector.extract_strided_slice %1 {offsets = [0, 0], sizes = [16, 96], strides = [1, 1]} : vector<16x128xf32> to vector<16x96xf32>
    %7 = tpu.concatenate %3, %6 in 1 : vector<16x32xf32>, vector<16x96xf32> -> vector<16x128xf32>
    %8 = vector.extract_strided_slice %1 {offsets = [0, 32], sizes = [16, 96], strides = [1, 1]} : vector<16x128xf32> to vector<16x96xf32>
    %9 = tpu.concatenate %8, %5 in 1 : vector<16x96xf32>, vector<16x32xf32> -> vector<16x128xf32>
    %10 = tpu.concatenate %7, %1, %9 in 0 : vector<16x128xf32>, vector<16x128xf32>, vector<16x128xf32> -> vector<48x128xf32>
    %c0_10 = arith.constant 0 : index
    %c0_11 = arith.constant 0 : index
    %11 = vector.load %arg5[%c0_10, %c0_11] : memref<16x48xf32, #tpu.memory_space<vmem>>, vector<16x48xf32>
    %cst = arith.constant dense<0.000000e+00> : vector<16x128xf32>
    %12 = tpu.matmul %11, %10, %cst {dimension_numbers = #tpu.dot_dimension_numbers<[1], [0], [0], [1], [0, 0, 1, 1], [], []>} : vector<16x48xf32>, vector<48x128xf32>, vector<16x128xf32> -> vector<16x128xf32>
    %c0_12 = arith.constant 0 : index
    %c0_13 = arith.constant 0 : index
    %13 = vector.load %arg6[%c0_12, %c0_13] : memref<16x1xf32, #tpu.memory_space<vmem>>, vector<16x1xf32>
    %14 = vector.broadcast %13 : vector<16x1xf32> to vector<16x128xf32>
    %15 = arith.addf %12, %14 : vector<16x128xf32>
    %cst_14 = arith.constant 0.000000e+00 : f32
    %16 = vector.broadcast %cst_14 : f32 to vector<16x128xf32>
    %17 = arith.maximumf %15, %16 : vector<16x128xf32>
    %c0_15 = arith.constant 0 : index
    %c0_16 = arith.constant 0 : index
    %18 = vector.load %arg7[%c0_15, %c0_16] : memref<16x16xf32, #tpu.memory_space<vmem>>, vector<16x16xf32>
    %cst_17 = arith.constant dense<0.000000e+00> : vector<16x128xf32>
    %19 = tpu.matmul %18, %17, %cst_17 {dimension_numbers = #tpu.dot_dimension_numbers<[1], [0], [0], [1], [0, 0, 1, 1], [], []>} : vector<16x16xf32>, vector<16x128xf32>, vector<16x128xf32> -> vector<16x128xf32>
    %c0_18 = arith.constant 0 : index
    %c0_19 = arith.constant 0 : index
    %20 = vector.load %arg8[%c0_18, %c0_19] : memref<16x1xf32, #tpu.memory_space<vmem>>, vector<16x1xf32>
    %21 = vector.broadcast %20 : vector<16x1xf32> to vector<16x128xf32>
    %22 = arith.addf %19, %21 : vector<16x128xf32>
    %23 = arith.addf %1, %22 : vector<16x128xf32>
    %c0_20 = arith.constant 0 : index
    %c0_21 = arith.constant 0 : index
    %c0_22 = arith.constant 0 : index
    %24 = vector.load %arg9[%c0_20, %c0_21, %c0_22] : memref<1x16x128xf32, #tpu.memory_space<vmem>>, vector<1x16x128xf32>
    %25 = vector.shape_cast %24 : vector<1x16x128xf32> to vector<16x128xf32>
    %26 = vector.shape_cast %23 : vector<16x128xf32> to vector<1x16x128xf32>
    tpu.vector_store %arg9[%c0_20, %c0_21, %c0_22], %26 {strides = array<i32>} : memref<1x16x128xf32, #tpu.memory_space<vmem>>, vector<1x16x128xf32>,
    return
  }
  func.func @transform_0(%arg0: i32, %arg1: i32) -> (i32, i32, i32) {
    %c0_i32 = arith.constant 0 : i32
    %c0_i32_0 = arith.constant 0 : i32
    return %arg0, %c0_i32, %arg1 : i32, i32, i32
  }
  func.func @transform_1(%arg0: i32, %arg1: i32) -> (i32, i32, i32, i32) {
    %c0_i32 = arith.constant 0 : i32
    %c0_i32_0 = arith.constant 0 : i32
    %c0_i32_1 = arith.constant 0 : i32
    return %arg0, %arg1, %c0_i32, %c0_i32_0 : i32, i32, i32, i32
  }
  func.func @transform_2(%arg0: i32, %arg1: i32) -> (i32, i32, i32, i32) {
    %c0_i32 = arith.constant 0 : i32
    %c0_i32_0 = arith.constant 0 : i32
    %c0_i32_1 = arith.constant 0 : i32
    return %arg0, %arg1, %c0_i32, %c0_i32_0 : i32, i32, i32, i32
  }
  func.func @transform_3(%arg0: i32, %arg1: i32) -> (i32, i32) {
    %c0_i32 = arith.constant 0 : i32
    %c0_i32_0 = arith.constant 0 : i32
    %c0_i32_1 = arith.constant 0 : i32
    return %c0_i32, %c0_i32_0 : i32, i32
  }
  func.func @transform_4(%arg0: i32, %arg1: i32) -> (i32, i32) {
    %c0_i32 = arith.constant 0 : i32
    %c0_i32_0 = arith.constant 0 : i32
    %c0_i32_1 = arith.constant 0 : i32
    return %c0_i32, %c0_i32_0 : i32, i32
  }
  func.func @transform_5(%arg0: i32, %arg1: i32) -> (i32, i32) {
    %c0_i32 = arith.constant 0 : i32
    %c0_i32_0 = arith.constant 0 : i32
    %c0_i32_1 = arith.constant 0 : i32
    return %c0_i32, %c0_i32_0 : i32, i32
  }
  func.func @transform_6(%arg0: i32, %arg1: i32) -> (i32, i32) {
    %c0_i32 = arith.constant 0 : i32
    %c0_i32_0 = arith.constant 0 : i32
    %c0_i32_1 = arith.constant 0 : i32
    return %c0_i32, %c0_i32_0 : i32, i32
  }
  func.func @transform_7(%arg0: i32, %arg1: i32) -> (i32, i32, i32) {
    %c0_i32 = arith.constant 0 : i32
    %c0_i32_0 = arith.constant 0 : i32
    return %arg0, %c0_i32, %arg1 : i32, i32, i32
  }
}

</mosaic_0001>

<llo_original>
// kernel: tpu_custom_call.1
$region0: #{tpu_custom_call.1}
  #allocation0 [shape = 'u32[]', space=smem, size = 0x4, offset = 0x4, fixed_abs, tag = 'smem constant byte address 0x4 - core index']
  #allocation1 [shape = 'u32[144,128]{1,0:T(1,128)}', space=vmem, size = 0x12000, scoped, tag = 'internal scratch']
  %s0 = inlined_call_operand.hbm [shape: f32[2,16,512], index: 0, kind: input, shape index: {}]
  %s1 = inlined_call_operand.hbm [shape: f32[2,4,16,32], index: 1, kind: input, shape index: {}]
  %s2 = inlined_call_operand.hbm [shape: f32[2,4,16,32], index: 2, kind: input, shape index: {}]
  %s3 = inlined_call_operand.vmem [shape: f32[16,48], index: 3, kind: input, shape index: {}]
  %s4 = inlined_call_operand.vmem [shape: f32[16,1], index: 4, kind: input, shape index: {}]
  %s5 = inlined_call_operand.vmem [shape: f32[16,16], index: 5, kind: input, shape index: {}]
  %s6 = inlined_call_operand.vmem [shape: f32[16,1], index: 6, kind: input, shape index: {}]
  %s7 = inlined_call_operand.hbm [shape: f32[2,16,512], index: 7, kind: output, shape index: {}]
  %s8 = sld [smem:[#allocation0]]
  $region73: #{tpu_custom_call.1} parent=0
    _
  %s10 = ssub.s32 1, %s8
  %s11 = scalar_select 0, %s10, %s8
  $region1: #{tpu_custom_call.1} parent=0
    #allocation2 [shape = 'u8[16384]{0}', space=vmem, size = 0x4000, scoped, tag = 'input window, operand 0']
    #allocation3 [shape = 's32[2]{0}', space=sflag, size = 0x8, scoped, tag = 'scoped memory for tpu_custom_call.1']
    #allocation4 [shape = 's32[2]{0}', space=sflag, size = 0x8, scoped, tag = 'scoped memory for tpu_custom_call.1']
    #allocation5 [shape = 'u8[16384]{0}', space=vmem, size = 0x4000, scoped, tag = 'input window, operand 1']
    #allocation6 [shape = 's32[2]{0}', space=sflag, size = 0x8, scoped, tag = 'scoped memory for tpu_custom_call.1']
    #allocation7 [shape = 'u8[16384]{0}', space=vmem, size = 0x4000, scoped, tag = 'input window, operand 2']
    #allocation8 [shape = 'u8[16384]{0}', space=vmem, size = 0x4000, scoped, tag = 'output window, operand 0']
    %12 = vsyncpa [#allocation3], 0
    %s13 = scalar_lea.sflag [#allocation3], 1
    %14 = vsyncpa %s13, 0
    %15 = vsyncpa [#allocation6], 0
    %s16 = scalar_lea.sflag [#allocation6], 1
    %17 = vsyncpa %s16, 0
    %18 = vsyncpa [#allocation4], 0
    %s19 = scalar_lea.sflag [#allocation4], 1
    %20 = vsyncpa %s19, 0
    loop: start=0, step=1, limit=10
    $region2: #{tpu_custom_call.1} parent=1 // loop_pre_header
      _
    $region3: #{tpu_custom_call.1} parent=1 // loop_header
      %s22 = sphi 0, %s26
      %p23 = scmp.ge.s32.totalorder %s22, 10
      %s29 = sphi 0, %s41
      %s30 = sphi 0, %s37
      %s31 = sphi 0, %s29
      %s32 = sphi 0, %s30
      %s33 = sphi 0, %s31
      %s34 = sphi 0, %s32
      %s46 = sphi 0, %s48
      %s49 = sphi 0, %s46
      %s50 = sphi 0, %s49
      %s66 = sphi 0, %s50
      %s74 = sphi 0, %s76
      %s77 = sphi 0, %s74
      %s78 = sphi 0, %s77
      %s94 = sphi 0, %s78
      %s102 = sphi 0, %s104
      %s105 = sphi 0, %s102
      %s106 = sphi 0, %s105
      %s122 = sphi 0, %s106
      %s126 = sphi 0, %s126
      %s128 = sphi 0, %s126
      %s129 = sphi 0, %s128
      %s143 = sphi 0, %s129
      %s147 = sphi 0, %s147
      %s149 = sphi 0, %s147
      %s150 = sphi 0, %s149
      %s164 = sphi 0, %s150
      %s168 = sphi 0, %s168
      %s170 = sphi 0, %s168
      %s171 = sphi 0, %s170
      %s185 = sphi 0, %s171
      %s189 = sphi 0, %s189
      %s191 = sphi 0, %s189
      %s192 = sphi 0, %s191
      %s206 = sphi 0, %s192
      %s214 = sphi 0, %s216
      %s217 = sphi 0, %s214
      %s218 = sphi 0, %s217
      %s234 = sphi 0, %s218
    $region4: #{tpu_custom_call.1} parent=1 // loop_header_branch
      %25 = sbr.rel (%p23) target = $region8
    $region5: #{tpu_custom_call.1} parent=1 // loop_body
      %s27 = ssub.s32 %s22, 1
      %s28 = ssub.s32 %s22, 2
      %s35 = sadd.s32 1, %s30
      %p36 = scmp.ge.s32.totalorder %s35, 4
      %s37 = scalar_select %p36, 0, %s35
      %s38 = sadd.s32 1, %s29
      %s39 = scalar_select %p36, %s38, %s29
      %p40 = scmp.ge.s32.totalorder %s39, 2
      %s41 = scalar_select %p40, 0, %s39
      %s42 = ssub.s32 %s29, %s41
      %s43 = ssub.s32 %s30, %s37
      %s44 = sor.u32 %s42, %s43
      %p45 = scmp.eq.s32.totalorder %s44, 0
      %s47 = sadd.s32 %s46, 1
      %s48 = scalar_select %p45, %s46, %s47
      %p51 = pneg %p45
      %p52 = scmp.eq.s32.totalorder %s22, 7
      %p53 = por %p51, %p52
      %p54 = scmp.ne.s32.totalorder %s46, %s49
      %p55 = scmp.eq.s32.totalorder %s22, 0
      %p56 = por %p54, %p55
      %p57 = scmp.ne.s32.totalorder %s46, %s49
      %p58 = scmp.eq.s32.totalorder %s27, 7
      %p59 = por %p57, %p58
      %p60 = scmp.ne.s32.totalorder %s49, %s50
      %p61 = scmp.eq.s32.totalorder %s27, 0
      %p62 = por %p60, %p61
      %p63 = scmp.ne.s32.totalorder %s49, %s50
      %p64 = scmp.eq.s32.totalorder %s28, 7
      %p65 = por %p63, %p64
      %p67 = scmp.ne.s32.totalorder %s50, %s66
      %p68 = scmp.eq.s32.totalorder %s28, 0
      %p69 = por %p67, %p68
      %s70 = ssub.s32 %s29, %s41
      %s71 = ssub.s32 %s30, %s37
      %s72 = sor.u32 %s70, %s71
      %p73 = scmp.eq.s32.totalorder %s72, 0
      %s75 = sadd.s32 %s74, 1
      %s76 = scalar_select %p73, %s74, %s75
      %p79 = pneg %p73
      %p80 = scmp.eq.s32.totalorder %s22, 7
      %p81 = por %p79, %p80
      %p82 = scmp.ne.s32.totalorder %s74, %s77
      %p83 = scmp.eq.s32.totalorder %s22, 0
      %p84 = por %p82, %p83
      %p85 = scmp.ne.s32.totalorder %s74, %s77
      %p86 = scmp.eq.s32.totalorder %s27, 7
      %p87 = por %p85, %p86
      %p88 = scmp.ne.s32.totalorder %s77, %s78
      %p89 = scmp.eq.s32.totalorder %s27, 0
      %p90 = por %p88, %p89
      %p91 = scmp.ne.s32.totalorder %s77, %s78
      %p92 = scmp.eq.s32.totalorder %s28, 7
      %p93 = por %p91, %p92
      %p95 = scmp.ne.s32.totalorder %s78, %s94
      %p96 = scmp.eq.s32.totalorder %s28, 0
      %p97 = por %p95, %p96
      %s98 = ssub.s32 %s29, %s41
      %s99 = ssub.s32 %s30, %s37
      %s100 = sor.u32 %s98, %s99
      %p101 = scmp.eq.s32.totalorder %s100, 0
      %s103 = sadd.s32 %s102, 1
      %s104 = scalar_select %p101, %s102, %s103
      %p107 = pneg %p101
      %p108 = scmp.eq.s32.totalorder %s22, 7
      %p109 = por %p107, %p108
      %p110 = scmp.ne.s32.totalorder %s102, %s105
      %p111 = scmp.eq.s32.totalorder %s22, 0
      %p112 = por %p110, %p111
      %p113 = scmp.ne.s32.totalorder %s102, %s105
      %p114 = scmp.eq.s32.totalorder %s27, 7
      %p115 = por %p113, %p114
      %p116 = scmp.ne.s32.totalorder %s105, %s106
      %p117 = scmp.eq.s32.totalorder %s27, 0
      %p118 = por %p116, %p117
      %p119 = scmp.ne.s32.totalorder %s105, %s106
      %p120 = scmp.eq.s32.totalorder %s28, 7
      %p121 = por %p119, %p120
      %p123 = scmp.ne.s32.totalorder %s106, %s122
      %p124 = scmp.eq.s32.totalorder %s28, 0
      %p125 = por %p123, %p124
      %s127 = sadd.s32 %s126, 1
      %p130 = scmp.eq.s32.totalorder %s22, 7
      %p131 = scmp.ne.s32.totalorder %s126, %s128
      %p132 = scmp.eq.s32.totalorder %s22, 0
      %p133 = por %p131, %p132
      %p134 = scmp.ne.s32.totalorder %s126, %s128
      %p135 = scmp.eq.s32.totalorder %s27, 7
      %p136 = por %p134, %p135
      %p137 = scmp.ne.s32.totalorder %s128, %s129
      %p138 = scmp.eq.s32.totalorder %s27, 0
      %p139 = por %p137, %p138
      %p140 = scmp.ne.s32.totalorder %s128, %s129
      %p141 = scmp.eq.s32.totalorder %s28, 7
      %p142 = por %p140, %p141
      %p144 = scmp.ne.s32.totalorder %s129, %s143
      %p145 = scmp.eq.s32.totalorder %s28, 0
      %p146 = por %p144, %p145
      %s148 = sadd.s32 %s147, 1
      %p151 = scmp.eq.s32.totalorder %s22, 7
      %p152 = scmp.ne.s32.totalorder %s147, %s149
      %p153 = scmp.eq.s32.totalorder %s22, 0
      %p154 = por %p152, %p153
      %p155 = scmp.ne.s32.totalorder %s147, %s149
      %p156 = scmp.eq.s32.totalorder %s27, 7
      %p157 = por %p155, %p156
      %p158 = scmp.ne.s32.totalorder %s149, %s150
      %p159 = scmp.eq.s32.totalorder %s27, 0
      %p160 = por %p158, %p159
      %p161 = scmp.ne.s32.totalorder %s149, %s150
      %p162 = scmp.eq.s32.totalorder %s28, 7
      %p163 = por %p161, %p162
      %p165 = scmp.ne.s32.totalorder %s150, %s164
      %p166 = scmp.eq.s32.totalorder %s28, 0
      %p167 = por %p165, %p166
      %s169 = sadd.s32 %s168, 1
      %p172 = scmp.eq.s32.totalorder %s22, 7
      %p173 = scmp.ne.s32.totalorder %s168, %s170
      %p174 = scmp.eq.s32.totalorder %s22, 0
      %p175 = por %p173, %p174
      %p176 = scmp.ne.s32.totalorder %s168, %s170
      %p177 = scmp.eq.s32.totalorder %s27, 7
      %p178 = por %p176, %p177
      %p179 = scmp.ne.s32.totalorder %s170, %s171
      %p180 = scmp.eq.s32.totalorder %s27, 0
      %p181 = por %p179, %p180
      %p182 = scmp.ne.s32.totalorder %s170, %s171
      %p183 = scmp.eq.s32.totalorder %s28, 7
      %p184 = por %p182, %p183
      %p186 = scmp.ne.s32.totalorder %s171, %s185
      %p187 = scmp.eq.s32.totalorder %s28, 0
      %p188 = por %p186, %p187
      %s190 = sadd.s32 %s189, 1
      %p193 = scmp.eq.s32.totalorder %s22, 7
      %p194 = scmp.ne.s32.totalorder %s189, %s191
      %p195 = scmp.eq.s32.totalorder %s22, 0
      %p196 = por %p194, %p195
      %p197 = scmp.ne.s32.totalorder %s189, %s191
      %p198 = scmp.eq.s32.totalorder %s27, 7
      %p199 = por %p197, %p198
      %p200 = scmp.ne.s32.totalorder %s191, %s192
      %p201 = scmp.eq.s32.totalorder %s27, 0
      %p202 = por %p200, %p201
      %p203 = scmp.ne.s32.totalorder %s191, %s192
      %p204 = scmp.eq.s32.totalorder %s28, 7
      %p205 = por %p203, %p204
      %p207 = scmp.ne.s32.totalorder %s192, %s206
      %p208 = scmp.eq.s32.totalorder %s28, 0
      %p209 = por %p207, %p208
      %s210 = ssub.s32 %s29, %s41
      %s211 = ssub.s32 %s30, %s37
      %s212 = sor.u32 %s210, %s211
      %p213 = scmp.eq.s32.totalorder %s212, 0
      %s215 = sadd.s32 %s214, 1
      %s216 = scalar_select %p213, %s214, %s215
      %p219 = pneg %p213
      %p220 = scmp.eq.s32.totalorder %s22, 7
      %p221 = por %p219, %p220
      %p222 = scmp.ne.s32.totalorder %s214, %s217
      %p223 = scmp.eq.s32.totalorder %s22, 0
      %p224 = por %p222, %p223
      %p225 = scmp.ne.s32.totalorder %s214, %s217
      %p226 = scmp.eq.s32.totalorder %s27, 7
      %p227 = por %p225, %p226
      %p228 = scmp.ne.s32.totalorder %s217, %s218
      %p229 = scmp.eq.s32.totalorder %s27, 0
      %p230 = por %p228, %p229
      %p231 = scmp.ne.s32.totalorder %s217, %s218
      %p232 = scmp.eq.s32.totalorder %s28, 7
      %p233 = por %p231, %p232
      %p235 = scmp.ne.s32.totalorder %s218, %s234
      %p236 = scmp.eq.s32.totalorder %s28, 0
      %p237 = por %p235, %p236
      %p238 = scmp.le.s32.totalorder 1, %s22
      %p239 = scmp.lt.s32.totalorder %s22, 9
      %p240 = pnand %p238, %p239
      %p241 = pneg %p240
      // Predicated region
      $region9: #{tpu_custom_call.1} parent=5 // pred_check
        _
      $region10: #{tpu_custom_call.1} parent=5 // pred_check_branch
        %243 = sbr.rel (%p240) target = $region12
      $region11: #{tpu_custom_call.1} parent=5 // pred_region
        %s244 = ssub.s32 %s22, 1
        // Predicated region
        $region13: #{tpu_custom_call.1} parent=11 // pred_check
          %p245 = pneg %p139
        $region14: #{tpu_custom_call.1} parent=11 // pred_check_branch
          %247 = sbr.rel (%p245) target = $region16
        $region15: #{tpu_custom_call.1} parent=11 // pred_region
          _
        $region16: #{tpu_custom_call.1} parent=11 // pred_fallthru
          _
        // Predicated region
        $region17: #{tpu_custom_call.1} parent=11 // pred_check
          %p248 = pneg %p160
        $region18: #{tpu_custom_call.1} parent=11 // pred_check_branch
          %250 = sbr.rel (%p248) target = $region20
        $region19: #{tpu_custom_call.1} parent=11 // pred_region
          _
        $region20: #{tpu_custom_call.1} parent=11 // pred_fallthru
          _
        // Predicated region
        $region21: #{tpu_custom_call.1} parent=11 // pred_check
          %p251 = pneg %p181
        $region22: #{tpu_custom_call.1} parent=11 // pred_check_branch
          %253 = sbr.rel (%p251) target = $region24
        $region23: #{tpu_custom_call.1} parent=11 // pred_region
          _
        $region24: #{tpu_custom_call.1} parent=11 // pred_fallthru
          _
        // Predicated region
        $region25: #{tpu_custom_call.1} parent=11 // pred_check
          %p254 = pneg %p202
        $region26: #{tpu_custom_call.1} parent=11 // pred_check_branch
          %256 = sbr.rel (%p254) target = $region28
        $region27: #{tpu_custom_call.1} parent=11 // pred_region
          _
        $region28: #{tpu_custom_call.1} parent=11 // pred_fallthru
          _
      $region12: #{tpu_custom_call.1} parent=5 // pred_fallthru
        _
      %p257 = scmp.lt.s32.totalorder %s22, 8
      // Predicated region
      $region29: #{tpu_custom_call.1} parent=5 // pred_check
        %p258 = pneg %p257
      $region30: #{tpu_custom_call.1} parent=5 // pred_check_branch
        %260 = sbr.rel (%p258) target = $region32
      $region31: #{tpu_custom_call.1} parent=5 // pred_region
        // Predicated region
        $region33: #{tpu_custom_call.1} parent=31 // pred_check
          %p261 = pneg %p56
        $region34: #{tpu_custom_call.1} parent=31 // pred_check_branch
          %263 = sbr.rel (%p261) target = $region36
        $region35: #{tpu_custom_call.1} parent=31 // pred_region
          %s264 = sand.u32 %s46, 1
          %s265 = scalar_lea.sflag [#allocation3], %s264
          %s266 = sand.u32 %s46, 1
          %s267 = smul.addr %s266, 16
          %s268 = scalar_lea.vmem [#allocation2], %s267
          %s270 = ssub.s32 256, 256
          %271 = vsyncadd %s265, %s270
          %s272 = smul.addr %s29, 8
          %s273 = sadd.s32 %s30, %s272
          %s274 = smul.addr %s273, 128
          %s275 = scalar_lea.hbm %s0, %s274
          %s276 = sshll.u32 %s268, 4
          %s277 = int_to_ptr.vmem [resolvable:$true] %s276
          %282 = dma.hbm_to_vmem [thread:$0]  %s275, 256, %s277, %s265, 512, 128, 8
        $region36: #{tpu_custom_call.1} parent=31 // pred_fallthru
          _
        // Predicated region
        $region37: #{tpu_custom_call.1} parent=31 // pred_check
          %p283 = pneg %p84
        $region38: #{tpu_custom_call.1} parent=31 // pred_check_branch
          %285 = sbr.rel (%p283) target = $region40
        $region39: #{tpu_custom_call.1} parent=31 // pred_region
          %s286 = sand.u32 %s22, 1
          %s287 = scalar_lea.sflag [#allocation6], %s286
          %s288 = sand.u32 %s74, 1
          %s289 = smul.addr %s288, 16
          %s290 = scalar_lea.vmem [#allocation5], %s289
          %s292 = ssub.s32 256, 256
          %293 = vsyncadd %s287, %s292
          %s294 = smul.addr %s30, 2
          %s295 = smul.addr %s29, 8
          %s296 = sadd.s32 %s294, %s295
          %s297 = smul.addr %s296, 128
          %s298 = scalar_lea.hbm %s1, %s297
          %s299 = sshll.u32 %s290, 4
          %s300 = int_to_ptr.vmem [resolvable:$true] %s299
          %305 = dma.hbm_to_vmem [thread:$0]  %s298, 256, %s300, %s287, 128, 128, 8
        $region40: #{tpu_custom_call.1} parent=31 // pred_fallthru
          _
        // Predicated region
        $region41: #{tpu_custom_call.1} parent=31 // pred_check
          %p306 = pneg %p112
        $region42: #{tpu_custom_call.1} parent=31 // pred_check_branch
          %308 = sbr.rel (%p306) target = $region44
        $region43: #{tpu_custom_call.1} parent=31 // pred_region
          %s309 = sand.u32 %s22, 1
          %s310 = scalar_lea.sflag [#allocation6], %s309
          %s311 = sand.u32 %s102, 1
          %s312 = smul.addr %s311, 16
          %s313 = scalar_lea.vmem [#allocation7], %s312
          %s315 = ssub.s32 256, 256
          %316 = vsyncadd %s310, %s315
          %s317 = smul.addr %s30, 2
          %s318 = smul.addr %s29, 8
          %s319 = sadd.s32 %s317, %s318
          %s320 = smul.addr %s319, 128
          %s321 = scalar_lea.hbm %s2, %s320
          %s322 = sshll.u32 %s313, 4
          %s323 = int_to_ptr.vmem [resolvable:$true] %s322
          %328 = dma.hbm_to_vmem [thread:$0]  %s321, 256, %s323, %s310, 128, 128, 8
        $region44: #{tpu_custom_call.1} parent=31 // pred_fallthru
          _
      $region32: #{tpu_custom_call.1} parent=5 // pred_fallthru
        _
      %p329 = scmp.le.s32.totalorder 1, %s22
      %p330 = scmp.lt.s32.totalorder %s22, 9
      %p331 = pnand %p329, %p330
      %p332 = pneg %p331
      // Predicated region
      $region45: #{tpu_custom_call.1} parent=5 // pred_check
        _
      $region46: #{tpu_custom_call.1} parent=5 // pred_check_branch
        %334 = sbr.rel (%p331) target = $region48
      $region47: #{tpu_custom_call.1} parent=5 // pred_region
        %s335 = ssub.s32 %s22, 1
        %s336 = sand.u32 %s49, 1
        %s337 = scalar_lea.sflag [#allocation3], %s336
        %s338 = sand.u32 %s49, 1
        %s339 = smul.addr %s338, 16
        %s340 = scalar_lea.vmem [#allocation2], %s339
        // Predicated region
        $region49: #{tpu_custom_call.1} parent=47 // pred_check
          %p341 = pneg %p62
        $region50: #{tpu_custom_call.1} parent=47 // pred_check_branch
          %343 = sbr.rel (%p341) target = $region52
        $region51: #{tpu_custom_call.1} parent=47 // pred_region
          %344 = dma.done %s337, 256
        $region52: #{tpu_custom_call.1} parent=47 // pred_fallthru
          _
        %s345 = sand.u32 %s27, 1
        %s346 = scalar_lea.sflag [#allocation6], %s345
        %s347 = sand.u32 %s77, 1
        %s348 = smul.addr %s347, 16
        %s349 = scalar_lea.vmem [#allocation5], %s348
        // Predicated region
        $region53: #{tpu_custom_call.1} parent=47 // pred_check
          %p350 = pneg %p90
        $region54: #{tpu_custom_call.1} parent=47 // pred_check_branch
          %352 = sbr.rel (%p350) target = $region56
        $region55: #{tpu_custom_call.1} parent=47 // pred_region
          %353 = dma.done %s346, 256
        $region56: #{tpu_custom_call.1} parent=47 // pred_fallthru
          _
        %s354 = sand.u32 %s27, 1
        %s355 = scalar_lea.sflag [#allocation6], %s354
        %s356 = sand.u32 %s105, 1
        %s357 = smul.addr %s356, 16
        %s358 = scalar_lea.vmem [#allocation7], %s357
        // Predicated region
        $region57: #{tpu_custom_call.1} parent=47 // pred_check
          %p359 = pneg %p118
        $region58: #{tpu_custom_call.1} parent=47 // pred_check_branch
          %361 = sbr.rel (%p359) target = $region60
        $region59: #{tpu_custom_call.1} parent=47 // pred_region
          %362 = dma.done %s355, 256
        $region60: #{tpu_custom_call.1} parent=47 // pred_fallthru
          _
        %s363 = sand.u32 %s49, 1
        %s364 = scalar_lea.sflag [#allocation3], %s363
        %s365 = sand.u32 %s49, 1
        %s366 = smul.addr %s365, 16
        %s367 = scalar_lea.vmem [#allocation2], %s366
        %p368 = pneg %p62
        %p369 = pneg %p59
        %s370 = sand.u32 %s27, 1
        %s371 = scalar_lea.sflag [#allocation6], %s370
        %s372 = sand.u32 %s77, 1
        %s373 = smul.addr %s372, 16
        %s374 = scalar_lea.vmem [#allocation5], %s373
        %p375 = pneg %p90
        %p376 = pneg %p87
        %s377 = sand.u32 %s27, 1
        %s378 = scalar_lea.sflag [#allocation6], %s377
        %s379 = sand.u32 %s105, 1
        %s380 = smul.addr %s379, 16
        %s381 = scalar_lea.vmem [#allocation7], %s380
        %p382 = pneg %p118
        %p383 = pneg %p115
        %p384 = pneg %p139
        %p385 = pneg %p136
        %p386 = pneg %p160
        %p387 = pneg %p157
        %p388 = pneg %p181
        %p389 = pneg %p178
        %p390 = pneg %p202
        %p391 = pneg %p199
        %p392 = pneg %p230
        %p393 = pneg %p227
        %s394 = sand.u32 %s217, 1
        %s395 = scalar_lea.sflag [#allocation4], %s394
        %s396 = sand.u32 %s217, 1
        %s397 = smul.addr %s396, 16
        %s398 = scalar_lea.vmem [#allocation8], %s397
        %v399 = vld [vmem:[%s340] sm:$0xff]
        %v400 = vld [vmem:[%s340 + $0x8] sm:$0xff]
        %v401 = vld [vmem:[%s349] sm:$0xff]
        %v402 = vld [vmem:[%s349 + $0x8] sm:$0xff]
        %v403 = vld [vmem:[%s358] sm:$0xff]
        %v404 = vld [vmem:[%s358 + $0x8] sm:$0xff]
        %407 = vrot.lane.b32.xlu0 %v399, 32
        %v408 = vpop.permute.xlu0 %407
        %409 = vrot.lane.b32.xlu0 %v400, 32
        %v410 = vpop.permute.xlu0 %409
        %vm413 = vcmask 261120
        %v414 = vsel %vm413, %v401, %v408
        %v415 = vsel %vm413, %v402, %v410
        %416 = vrot.lane.b32.xlu0 %v399, 96
        %v417 = vpop.permute.xlu0 %416
        %418 = vrot.lane.b32.xlu0 %v400, 96
        %v419 = vpop.permute.xlu0 %418
        %424 = vrot.lane.b32.xlu0 %v403, 96
        %v425 = vpop.permute.xlu0 %424
        %426 = vrot.lane.b32.xlu0 %v404, 96
        %v427 = vpop.permute.xlu0 %426
        %vm430 = vcmask 785408
        %v431 = vsel %vm430, %v417, %v425
        %v432 = vsel %vm430, %v419, %v427
        %v433 = vld [vmem:[%s3] sm:$0xff]
        %v434 = vld [vmem:[%s3 + $0x8] sm:$0xff]
        %v435 = vld [vmem:[%s4] sm:$0xff]
        %v436 = vld [vmem:[%s4 + $0x8] sm:$0xff]
        %438 = vset.pattern.permute.xlu0 0
        %439 = vperm.xlu0 %438, %v435
        %v440 = vpop.permute.xlu0 %439
        %443 = vset.pattern.permute.xlu0 0
        %444 = vperm.xlu0 %443, %v436
        %v445 = vpop.permute.xlu0 %444
        %vm447 = vcmask 392192
        %v449 = vsel %vm447, %v433, 0
        %v452 = vsel %vm447, %v434, 0
        %454 = vmatprep.subr.mxu0 0.0
        %455 = vmatpush1.msra.mxu0 %v414
        %456 = vmatprep.subr.mxu0 0.0
        %457 = vmatpush1.msra.mxu0 %v415
        %458 = vmatprep.subr.mxu0 0.0
        %459 = vmatpush1.msra.mxu0 %v399
        %460 = vmatprep.subr.mxu0 0.0
        %461 = vmatpush1.msra.mxu0 %v400
        %462 = vmatprep.subr.mxu0 0.0
        %463 = vmatpush1.msra.mxu0 %v431
        %464 = vmatprep.subr.mxu0 0.0
        %465 = vmatpush1.msra.mxu0 %v432
        %466 = vmatprep.subr.mxu0 0.0
        %467 = vmatpush1.msra.mxu0 0.0
        %468 = vmatprep.subr.mxu0 0.0
        %469 = vmatpush1.msra.mxu0 0.0
        %470 = vmatprep.subr.mxu0 0.0
        %471 = vmatpush1.msra.mxu0 0.0
        %472 = vmatprep.subr.mxu0 0.0
        %473 = vmatpush1.msra.mxu0 0.0
        %474 = vmatprep.subr.mxu0 0.0
        %475 = vmatpush1.msra.mxu0 0.0
        %476 = vmatprep.subr.mxu0 0.0
        %477 = vmatpush1.msra.mxu0 0.0
        %478 = vmatprep.subr.mxu0 0.0
        %479 = vmatpush1.msra.mxu0 0.0
        %480 = vmatprep.subr.mxu0 0.0
        %481 = vmatpush1.msra.mxu0 0.0
        %482 = vmatprep.subr.mxu0 0.0
        %483 = vmatpush1.msra.mxu0 0.0
        %484 = vmatprep.subr.mxu0 0.0
        %485 = vmatpush1.msra.mxu0 0.0
        %486 = vmatprep.subr.mxu0 0.0
        %487 = vmatpush1.msra.mxu0 0.0
        %488 = vmatprep.subr.mxu0 0.0
        %489 = vmatpush1.msra.mxu0 0.0
        %490 = vmatprep.subr.mxu0 0.0
        %491 = vmatpush1.msra.mxu0 0.0
        %492 = vmatprep.subr.mxu0 0.0
        %493 = vmatpush1.msra.mxu0 0.0
        %494 = vmatprep.subr.mxu0 0.0
        %495 = vmatpush1.msra.mxu0 0.0
        %496 = vmatprep.subr.mxu0 0.0
        %497 = vmatpush1.msra.mxu0 0.0
        %498 = vmatprep.subr.mxu0 0.0
        %499 = vmatpush1.msra.mxu0 0.0
        %500 = vmatprep.subr.mxu0 0.0
        %501 = vmatpush1.msra.mxu0 0.0
        %502 = vmatprep.subr.mxu0 0.0
        %503 = vmatpush1.msra.mxu0 0.0
        %504 = vmatprep.subr.mxu0 0.0
        %505 = vmatpush1.msra.mxu0 0.0
        %506 = vmatprep.subr.mxu0 0.0
        %507 = vmatpush1.msra.mxu0 0.0
        %508 = vmatprep.subr.mxu0 0.0
        %509 = vmatpush1.msra.mxu0 0.0
        %510 = vmatprep.subr.mxu0 0.0
        %511 = vmatpush1.msra.mxu0 0.0
        %512 = vmatprep.subr.mxu0 0.0
        %513 = vmatpush1.msra.mxu0 0.0
        %514 = vmatprep.subr.mxu0 0.0
        %515 = vmatpush1.msra.mxu0 0.0
        %516 = vmatprep.subr.mxu0 0.0
        %517 = vmatpush1.msra.mxu0 0.0
        %518 = vmatprep.mubr.f32.mxu0 0.0
        %519 = vmatmul.mubr.f32.gmra.mrb[0].mxu0 %v449
        %v520 = vpop.f32.mrb[0].mxu0
        %v521 = vadd.f32 %v440, %v520
        %v522 = vpop.f32.mrb[0].mxu0
        %523 = vmatprep.mubr.f32.mxu0 0.0
        %524 = vmatmul.mubr.f32.gmra.mrb[0].mxu0 %v452
        %v525 = vpop.f32.mrb[0].mxu0
        %v526 = vadd.f32 %v445, %v525
        %v527 = vpop.f32.mrb[0].mxu0
        %528 = vdwg.mxu0
        %v529 = vmax.f32 %v521, 0.0
        %v530 = vmax.f32 %v526, 0.0
        %v531 = vld [vmem:[%s5] sm:$0xff]
        %v532 = vld [vmem:[%s5 + $0x8] sm:$0xff]
        %v533 = vld [vmem:[%s6] sm:$0xff]
        %v534 = vld [vmem:[%s6 + $0x8] sm:$0xff]
        %536 = vset.pattern.permute.xlu0 0
        %537 = vperm.xlu0 %536, %v533
        %v538 = vpop.permute.xlu0 %537
        %541 = vset.pattern.permute.xlu0 0
        %542 = vperm.xlu0 %541, %v534
        %v543 = vpop.permute.xlu0 %542
        %vm545 = vcmask 130048
        %v547 = vsel %vm545, %v531, 0
        %v550 = vsel %vm545, %v532, 0
        %552 = vmatprep.subr.mxu0 0.0
        %553 = vmatpush1.msra.mxu0 %v529
        %554 = vmatprep.subr.mxu0 0.0
        %555 = vmatpush1.msra.mxu0 %v530
        %556 = vmatprep.subr.mxu0 0.0
        %557 = vmatpush1.msra.mxu0 0.0
        %558 = vmatprep.subr.mxu0 0.0
        %559 = vmatpush1.msra.mxu0 0.0
        %560 = vmatprep.subr.mxu0 0.0
        %561 = vmatpush1.msra.mxu0 0.0
        %562 = vmatprep.subr.mxu0 0.0
        %563 = vmatpush1.msra.mxu0 0.0
        %564 = vmatprep.subr.mxu0 0.0
        %565 = vmatpush1.msra.mxu0 0.0
        %566 = vmatprep.subr.mxu0 0.0
        %567 = vmatpush1.msra.mxu0 0.0
        %568 = vmatprep.subr.mxu0 0.0
        %569 = vmatpush1.msra.mxu0 0.0
        %570 = vmatprep.subr.mxu0 0.0
        %571 = vmatpush1.msra.mxu0 0.0
        %572 = vmatprep.subr.mxu0 0.0
        %573 = vmatpush1.msra.mxu0 0.0
        %574 = vmatprep.subr.mxu0 0.0
        %575 = vmatpush1.msra.mxu0 0.0
        %576 = vmatprep.subr.mxu0 0.0
        %577 = vmatpush1.msra.mxu0 0.0
        %578 = vmatprep.subr.mxu0 0.0
        %579 = vmatpush1.msra.mxu0 0.0
        %580 = vmatprep.subr.mxu0 0.0
        %581 = vmatpush1.msra.mxu0 0.0
        %582 = vmatprep.subr.mxu0 0.0
        %583 = vmatpush1.msra.mxu0 0.0
        %584 = vmatprep.subr.mxu0 0.0
        %585 = vmatpush1.msra.mxu0 0.0
        %586 = vmatprep.subr.mxu0 0.0
        %587 = vmatpush1.msra.mxu0 0.0
        %588 = vmatprep.subr.mxu0 0.0
        %589 = vmatpush1.msra.mxu0 0.0
        %590 = vmatprep.subr.mxu0 0.0
        %591 = vmatpush1.msra.mxu0 0.0
        %592 = vmatprep.subr.mxu0 0.0
        %593 = vmatpush1.msra.mxu0 0.0
        %594 = vmatprep.subr.mxu0 0.0
        %595 = vmatpush1.msra.mxu0 0.0
        %596 = vmatprep.subr.mxu0 0.0
        %597 = vmatpush1.msra.mxu0 0.0
        %598 = vmatprep.subr.mxu0 0.0
        %599 = vmatpush1.msra.mxu0 0.0
        %600 = vmatprep.subr.mxu0 0.0
        %601 = vmatpush1.msra.mxu0 0.0
        %602 = vmatprep.subr.mxu0 0.0
        %603 = vmatpush1.msra.mxu0 0.0
        %604 = vmatprep.subr.mxu0 0.0
        %605 = vmatpush1.msra.mxu0 0.0
        %606 = vmatprep.subr.mxu0 0.0
        %607 = vmatpush1.msra.mxu0 0.0
        %608 = vmatprep.subr.mxu0 0.0
        %609 = vmatpush1.msra.mxu0 0.0
        %610 = vmatprep.subr.mxu0 0.0
        %611 = vmatpush1.msra.mxu0 0.0
        %612 = vmatprep.subr.mxu0 0.0
        %613 = vmatpush1.msra.mxu0 0.0
        %614 = vmatprep.subr.mxu0 0.0
        %615 = vmatpush1.msra.mxu0 0.0
        %616 = vmatprep.mubr.f32.mxu0 0.0
        %617 = vmatmul.mubr.f32.gmra.mrb[0].mxu0 %v547
        %v618 = vpop.f32.mrb[0].mxu0
        %v619 = vadd.f32 %v538, %v618
        %v620 = vpop.f32.mrb[0].mxu0
        %621 = vmatprep.mubr.f32.mxu0 0.0
        %622 = vmatmul.mubr.f32.gmra.mrb[0].mxu0 %v550
        %v623 = vpop.f32.mrb[0].mxu0
        %v624 = vadd.f32 %v543, %v623
        %v625 = vpop.f32.mrb[0].mxu0
        %626 = vdwg.mxu0
        %v627 = vadd.f32 %v399, %v619
        %v628 = vadd.f32 %v400, %v624
        %629 = vst [vmem:[%s398] sm:$0xff] %v627
        %630 = vst [vmem:[%s398 + $0x8] sm:$0xff] %v628
        %s631 = sand.u32 %s217, 1
        %s632 = scalar_lea.sflag [#allocation4], %s631
        %s633 = sand.u32 %s217, 1
        %s634 = smul.addr %s633, 16
        %s635 = scalar_lea.vmem [#allocation8], %s634
        // Predicated region
        $region61: #{tpu_custom_call.1} parent=47 // pred_check
          %p636 = pneg %p227
        $region62: #{tpu_custom_call.1} parent=47 // pred_check_branch
          %638 = sbr.rel (%p636) target = $region64
        $region63: #{tpu_custom_call.1} parent=47 // pred_region
          %s640 = ssub.s32 256, 256
          %641 = vsyncadd %s632, %s640
          %s642 = smul.addr %s31, 8
          %s643 = sadd.s32 %s32, %s642
          %s644 = smul.addr %s643, 128
          %s645 = scalar_lea.hbm %s7, %s644
          %s646 = sshll.u32 %s635, 4
          %s647 = int_to_ptr.vmem [resolvable:$true] %s646
          %652 = dma.vmem_to_hbm [thread:$0]  %s647, 256, %s645, %s632, 128, 512, 8
        $region64: #{tpu_custom_call.1} parent=47 // pred_fallthru
          _
      $region48: #{tpu_custom_call.1} parent=5 // pred_fallthru
        _
      %p653 = scmp.le.s32.totalorder 2, %s22
      // Predicated region
      $region65: #{tpu_custom_call.1} parent=5 // pred_check
        %p654 = pneg %p653
      $region66: #{tpu_custom_call.1} parent=5 // pred_check_branch
        %656 = sbr.rel (%p654) target = $region68
      $region67: #{tpu_custom_call.1} parent=5 // pred_region
        %s657 = ssub.s32 %s22, 2
        // Predicated region
        $region69: #{tpu_custom_call.1} parent=67 // pred_check
          %p658 = pneg %p233
        $region70: #{tpu_custom_call.1} parent=67 // pred_check_branch
          %660 = sbr.rel (%p658) target = $region72
        $region71: #{tpu_custom_call.1} parent=67 // pred_region
          %s661 = sand.u32 %s218, 1
          %s662 = scalar_lea.sflag [#allocation4], %s661
          %s663 = sand.u32 %s218, 1
          %s664 = smul.addr %s663, 16
          %s665 = scalar_lea.vmem [#allocation8], %s664
          %666 = dma.done %s662, 256
        $region72: #{tpu_custom_call.1} parent=67 // pred_fallthru
          _
      $region68: #{tpu_custom_call.1} parent=5 // pred_fallthru
        _
    $region6: #{tpu_custom_call.1} parent=1 // loop_footer
      %s26 = sadd.s32 1, %s22
    $region7: #{tpu_custom_call.1} parent=1 // loop_footer_branch
      %21 = sbr.rel target = $region3
    $region8: #{tpu_custom_call.1} parent=1 // loop_exit
      _
    %667 = vsyncpa [#allocation3], 1
    %s668 = scalar_lea.sflag [#allocation3], 1
    %669 = vsyncpa %s668, 1
    %670 = vsyncpa [#allocation6], 1
    %s671 = scalar_lea.sflag [#allocation6], 1
    %672 = vsyncpa %s671, 1
    %673 = vsyncpa [#allocation4], 1
    %s674 = scalar_lea.sflag [#allocation4], 1
    %675 = vsyncpa %s674, 1

</llo_original>
